<compile_context>
chip_gen: v5e
topology: v5e:2x2
jax: 0.10.0
libtpu: 0.0.40
codegen_flags: <defaults>
</compile_context>

<pallas_src>
import functools

import jax
import jax.numpy as jnp
from jax.experimental import pallas as pl
from jax.experimental.pallas import tpu as pltpu

_LANES = 128
_SUBLANES = 8


def _round_up(n, m):
    return ((n + m - 1) // m) * m


@functools.lru_cache(maxsize=1)
def _num_tensorcores():
    """Best-effort TensorCores-per-device count (2 on v7x, else 1)."""
    n = 1
    try:
        info = pltpu.get_tpu_info()
        for attr in ("num_cores", "core_count", "num_tensorcores", "cores_per_chip"):
            v = getattr(info, attr, None)
            if v:
                n = int(v)
                break
    except Exception:
        pass
    if n <= 1:
        try:
            n = int(getattr(jax.devices()[0], "num_cores", 1))
        except Exception:
            n = 1
    # Per-chip TC count is 1 (v5e/v6e) or 2 (v7x); clamp to a sane range.
    return max(1, min(2, n))


def _choose_batch_tile(batch, num_cores, max_tile):
    """Pick (tile_rows, padded_batch) so the grid has ~num_cores steps (>=1)."""
    b8 = _round_up(batch, _SUBLANES)
    if num_cores > 1 and b8 >= num_cores * _SUBLANES:
        tb = _round_up(pl.cdiv(b8, num_cores), _SUBLANES)
    else:
        tb = b8  # single TensorCore: one grid step, no per-step overhead
    tb = max(_SUBLANES, min(tb, max_tile))
    b_p = _round_up(batch, tb)
    return tb, b_p


def _mlp_kernel(x_ref, w1_ref, b1_ref, w2_ref, b2_ref, out_ref):
    # Fused: matmul (MXU) -> bias + ReLU (VPU) -> matmul (MXU) -> bias -> store.
    x = x_ref[...]
    h = jnp.dot(x, w1_ref[...], preferred_element_type=jnp.float32) + b1_ref[...]
    h = jnp.maximum(h, 0.0)  # F.relu
    y = jnp.dot(h, w2_ref[...], preferred_element_type=jnp.float32) + b2_ref[...]
    out_ref[...] = y.astype(out_ref.dtype)


@functools.partial(jax.jit, static_argnames=("out_size", "num_cores", "max_tile"))
def _forward_padded(x, w1_p, b1_p, w2_p, b2_p, *, out_size, num_cores, max_tile):
    """x: (B, in) f32; w*/b* already lane-padded by prepare_padded_params."""
    B, in_size = x.shape
    hid_p = w1_p.shape[1]
    out_p = w2_p.shape[1]

    tb, b_p = _choose_batch_tile(B, num_cores, max_tile)
    if b_p != B:  # only pad x when the batch doesn't already fill the tiles
        x = jnp.pad(x, ((0, b_p - B), (0, 0)))

    cost = pl.CostEstimate(
        flops=2 * b_p * (in_size * hid_p + hid_p * out_p),
        transcendentals=0,
        bytes_accessed=4 * (b_p * in_size + in_size * hid_p + hid_p
                            + hid_p * out_p + out_p + b_p * out_p),
    )

    out_padded = pl.pallas_call(
        _mlp_kernel,
        out_shape=jax.ShapeDtypeStruct((b_p, out_p), jnp.float32),
        grid=(b_p // tb,),
        in_specs=[
            # Activation tiles stream along the batch grid axis.
            pl.BlockSpec((tb, in_size), lambda i: (i, 0)),
            # Weights/biases: constant index_map -> DMA'd once, VMEM-resident.
            pl.BlockSpec((in_size, hid_p), lambda i: (0, 0)),
            pl.BlockSpec((1, hid_p), lambda i: (0, 0)),
            pl.BlockSpec((hid_p, out_p), lambda i: (0, 0)),
            pl.BlockSpec((1, out_p), lambda i: (0, 0)),
        ],
        out_specs=pl.BlockSpec((tb, out_p), lambda i: (i, 0)),
        compiler_params=pltpu.CompilerParams(
            # Independent batch tiles: shard across TensorCores on v7x.
            dimension_semantics=("parallel",),
        ),
        cost_estimate=cost,
    )(x, w1_p, b1_p, w2_p, b2_p)

    # Slice away batch / lane padding outside the kernel.
    return out_padded[:B, :out_size]


def prepare_padded_params(w1, b1, w2, b2):
    """Lane-pad hidden/output feature dims to multiples of 128 ONCE (hoisted out
    of the per-call forward path).  Padding is numerically inert: padded hidden
    columns see ReLU(0 + 0) = 0 and padded w2 rows/cols are 0."""
    hidden = w1.shape[1]
    out_size = w2.shape[1]
    hid_p = _round_up(hidden, _LANES)
    out_p = _round_up(out_size, _LANES)
    w1_p = jnp.pad(w1, ((0, 0), (0, hid_p - hidden)))
    b1_p = jnp.pad(b1, ((0, 0), (0, hid_p - hidden)))
    w2_p = jnp.pad(w2, ((0, hid_p - hidden), (0, out_p - out_size)))
    b2_p = jnp.pad(b2, ((0, 0), (0, out_p - out_size)))
    return w1_p, b1_p, w2_p, b2_p, out_size


def linear_qnet_forward(x, padded_params, *, num_cores=None, max_tile=2048):
    """Forward pass of LinearQNet.  padded_params = prepare_padded_params(...)."""
    w1_p, b1_p, w2_p, b2_p, out_size = padded_params
    if num_cores is None:
        num_cores = _num_tensorcores()
    return _forward_padded(x, w1_p, b1_p, w2_p, b2_p,
                           out_size=out_size, num_cores=num_cores, max_tile=max_tile)


def init_params(key, input_size, hidden_size, output_size):
    """Deterministic init mimicking nn.Linear's U(-1/sqrt(fan_in), 1/sqrt(fan_in))."""
    k1, k2, k3, k4 = jax.random.split(key, 4)
    bound1 = 1.0 / jnp.sqrt(input_size)
    bound2 = 1.0 / jnp.sqrt(hidden_size)
    # Stored pre-transposed: (in_features, out_features).
    w1 = jax.random.uniform(k1, (input_size, hidden_size), jnp.float32, -bound1, bound1)
    b1 = jax.random.uniform(k2, (1, hidden_size), jnp.float32, -bound1, bound1)
    w2 = jax.random.uniform(k3, (hidden_size, output_size), jnp.float32, -bound2, bound2)
    b2 = jax.random.uniform(k4, (1, output_size), jnp.float32, -bound2, bound2)
    return w1, b1, w2, b2


def _reference(x, w1, b1, w2, b2):
    return jnp.maximum(x @ w1 + b1, 0.0) @ w2 + b2


# TODO(synk): LinearQNet.save() is host-side checkpoint file I/O, not a kernel op.

if __name__ == "__main__":
    # Cribbage Q-net sizes: input=32, hidden=64, out=16.
    input_size, hidden_size, output_size = 32, 64, 16

    key = jax.random.PRNGKey(0)
    kx, kp, kx2 = jax.random.split(key, 3)
    w1, b1, w2, b2 = init_params(kp, input_size, hidden_size, output_size)
    padded = prepare_padded_params(w1, b1, w2, b2)  # padding hoisted out of forward

    # Batched path: on single-TC parts this is 1 grid step; on v7x it splits in 2.
    batch = 256
    x = jax.random.normal(kx, (batch, input_size), dtype=jnp.float32)
    out = jax.block_until_ready(linear_qnet_forward(x, padded))
    ref = _reference(x, w1, b1, w2, b2)
    assert out.shape == (batch, output_size)
    assert jnp.allclose(out, ref, atol=1e-5, rtol=1e-5)

    # Ragged small batch exercises the batch-padding path (single grid step).
    x_small = jax.random.normal(kx2, (5, input_size), dtype=jnp.float32)
    out_small = jax.block_until_ready(linear_qnet_forward(x_small, padded))
    ref_small = _reference(x_small, w1, b1, w2, b2)
    assert out_small.shape == (5, output_size)
    assert jnp.allclose(out_small, ref_small, atol=1e-5, rtol=1e-5)

    # Explicitly exercise the 2-TensorCore (v7x-style) tile split: grid = 2.
    out_2core = jax.block_until_ready(linear_qnet_forward(x, padded, num_cores=2))
    assert jnp.allclose(out_2core, ref, atol=1e-5, rtol=1e-5)

    print("KERNEL_OK")
</pallas_src>

<mosaic_0001>
module attributes {stable_mosaic.version = 11 : i64} {
  func.func @_mlp_kernel(%arg0: i32, %arg1: memref<256x32xf32, #tpu.memory_space<vmem>>, %arg2: memref<32x128xf32, #tpu.memory_space<vmem>>, %arg3: memref<1x128xf32, #tpu.memory_space<vmem>>, %arg4: memref<128x128xf32, #tpu.memory_space<vmem>>, %arg5: memref<1x128xf32, #tpu.memory_space<vmem>>, %arg6: memref<256x128xf32, #tpu.memory_space<vmem>>) attributes {dimension_semantics = [#tpu.dimension_semantics<parallel>], iteration_bounds = array<i64: 1>, scalar_prefetch = 0 : i64, scratch_operands = 0 : i64, tpu.core_type = #tpu.core_type<tc>, window_params = [{transform_indices = @transform_0, window_bounds = array<i64: 256, 32>}, {pipeline_mode = #tpu.pipeline_mode<synchronous>, transform_indices = @transform_1, window_bounds = array<i64: 32, 128>}, {pipeline_mode = #tpu.pipeline_mode<synchronous>, transform_indices = @transform_2, window_bounds = array<i64: 1, 128>}, {pipeline_mode = #tpu.pipeline_mode<synchronous>, transform_indices = @transform_3, window_bounds = array<i64: 128, 128>}, {pipeline_mode = #tpu.pipeline_mode<synchronous>, transform_indices = @transform_4, window_bounds = array<i64: 1, 128>}, {transform_indices = @transform_5, window_bounds = array<i64: 256, 128>}]} {
    %c0 = arith.constant 0 : index
    %c0_0 = arith.constant 0 : index
    %0 = vector.load %arg1[%c0, %c0_0] : memref<256x32xf32, #tpu.memory_space<vmem>>, vector<256x32xf32>
    %c0_1 = arith.constant 0 : index
    %c0_2 = arith.constant 0 : index
    %1 = vector.load %arg2[%c0_1, %c0_2] : memref<32x128xf32, #tpu.memory_space<vmem>>, vector<32x128xf32>
    %cst = arith.constant dense<0.000000e+00> : vector<256x128xf32>
    %2 = tpu.matmul %0, %1, %cst {dimension_numbers = #tpu.dot_dimension_numbers<[1], [0], [0], [1], [0, 0, 1, 1], [], []>} : vector<256x32xf32>, vector<32x128xf32>, vector<256x128xf32> -> vector<256x128xf32>
    %c0_3 = arith.constant 0 : index
    %c0_4 = arith.constant 0 : index
    %3 = vector.load %arg3[%c0_3, %c0_4] : memref<1x128xf32, #tpu.memory_space<vmem>>, vector<1x128xf32>
    %4 = vector.broadcast %3 : vector<1x128xf32> to vector<256x128xf32>
    %5 = arith.addf %2, %4 : vector<256x128xf32>
    %cst_5 = arith.constant 0.000000e+00 : f32
    %6 = vector.broadcast %cst_5 : f32 to vector<256x128xf32>
    %7 = arith.maximumf %5, %6 : vector<256x128xf32>
    %c0_6 = arith.constant 0 : index
    %c0_7 = arith.constant 0 : index
    %8 = vector.load %arg4[%c0_6, %c0_7] : memref<128x128xf32, #tpu.memory_space<vmem>>, vector<128x128xf32>
    %cst_8 = arith.constant dense<0.000000e+00> : vector<256x128xf32>
    %9 = tpu.matmul %7, %8, %cst_8 {dimension_numbers = #tpu.dot_dimension_numbers<[1], [0], [0], [1], [0, 0, 1, 1], [], []>} : vector<256x128xf32>, vector<128x128xf32>, vector<256x128xf32> -> vector<256x128xf32>
    %c0_9 = arith.constant 0 : index
    %c0_10 = arith.constant 0 : index
    %10 = vector.load %arg5[%c0_9, %c0_10] : memref<1x128xf32, #tpu.memory_space<vmem>>, vector<1x128xf32>
    %11 = vector.broadcast %10 : vector<1x128xf32> to vector<256x128xf32>
    %12 = arith.addf %9, %11 : vector<256x128xf32>
    %c0_11 = arith.constant 0 : index
    %c0_12 = arith.constant 0 : index
    %13 = vector.load %arg6[%c0_11, %c0_12] : memref<256x128xf32, #tpu.memory_space<vmem>>, vector<256x128xf32>
    tpu.vector_store %arg6[%c0_11, %c0_12], %12 {strides = array<i32>} : memref<256x128xf32, #tpu.memory_space<vmem>>, vector<256x128xf32>,
    return
  }
  func.func @transform_0(%arg0: i32) -> (i32, i32) {
    %c0_i32 = arith.constant 0 : i32
    %c0_i32_0 = arith.constant 0 : i32
    return %arg0, %c0_i32 : i32, i32
  }
  func.func @transform_1(%arg0: i32) -> (i32, i32) {
    %c0_i32 = arith.constant 0 : i32
    %c0_i32_0 = arith.constant 0 : i32
    %c0_i32_1 = arith.constant 0 : i32
    return %c0_i32, %c0_i32_0 : i32, i32
  }
  func.func @transform_2(%arg0: i32) -> (i32, i32) {
    %c0_i32 = arith.constant 0 : i32
    %c0_i32_0 = arith.constant 0 : i32
    %c0_i32_1 = arith.constant 0 : i32
    return %c0_i32, %c0_i32_0 : i32, i32
  }
  func.func @transform_3(%arg0: i32) -> (i32, i32) {
    %c0_i32 = arith.constant 0 : i32
    %c0_i32_0 = arith.constant 0 : i32
    %c0_i32_1 = arith.constant 0 : i32
    return %c0_i32, %c0_i32_0 : i32, i32
  }
  func.func @transform_4(%arg0: i32) -> (i32, i32) {
    %c0_i32 = arith.constant 0 : i32
    %c0_i32_0 = arith.constant 0 : i32
    %c0_i32_1 = arith.constant 0 : i32
    return %c0_i32, %c0_i32_0 : i32, i32
  }
  func.func @transform_5(%arg0: i32) -> (i32, i32) {
    %c0_i32 = arith.constant 0 : i32
    %c0_i32_0 = arith.constant 0 : i32
    return %arg0, %c0_i32 : i32, i32
  }
}

</mosaic_0001>

<llo_original>
// kernel: _forward_padded.1
$region0: #{_forward_padded.1}
  #allocation0 [shape = 'u32[]', space=smem, size = 0x4, offset = 0x4, fixed_abs, tag = 'smem constant byte address 0x4 - core index']
  #allocation1 [shape = 'u32[72,128]{1,0:T(1,128)}', space=vmem, size = 0x9000, scoped, tag = 'internal scratch']
  %s0 = inlined_call_operand.vmem [shape: f32[256,32], index: 0, kind: input, shape index: {}]
  %s1 = inlined_call_operand.vmem [shape: f32[32,128], index: 1, kind: input, shape index: {}]
  %s2 = inlined_call_operand.vmem [shape: f32[1,128], index: 2, kind: input, shape index: {}]
  %s3 = inlined_call_operand.vmem [shape: f32[128,128], index: 3, kind: input, shape index: {}]
  %s4 = inlined_call_operand.vmem [shape: f32[1,128], index: 4, kind: input, shape index: {}]
  %s5 = inlined_call_operand.vmem [shape: f32[256,128], index: 5, kind: output, shape index: {}]
  %s6 = sld [smem:[#allocation0]]
  $region30: #{_forward_padded.1} parent=0
    _
  %s8 = ssub.s32 1, %s6
  %s9 = scalar_select 0, %s8, %s6
  // Predicated region
  $region2: #{_forward_padded.1} parent=0 // pred_check
    _
  $region3: #{_forward_padded.1} parent=0 // pred_check_branch
    %11 = sbr.rel (0) target = $region5
  $region4: #{_forward_padded.1} parent=0 // pred_region
    _
  $region5: #{_forward_padded.1} parent=0 // pred_fallthru
    _
  // Predicated region
  $region6: #{_forward_padded.1} parent=0 // pred_check
    _
  $region7: #{_forward_padded.1} parent=0 // pred_check_branch
    %13 = sbr.rel (0) target = $region9
  $region8: #{_forward_padded.1} parent=0 // pred_region
    _
  $region9: #{_forward_padded.1} parent=0 // pred_fallthru
    _
  // Predicated region
  $region10: #{_forward_padded.1} parent=0 // pred_check
    _
  $region11: #{_forward_padded.1} parent=0 // pred_check_branch
    %15 = sbr.rel (0) target = $region13
  $region12: #{_forward_padded.1} parent=0 // pred_region
    _
  $region13: #{_forward_padded.1} parent=0 // pred_fallthru
    _
  // Predicated region
  $region14: #{_forward_padded.1} parent=0 // pred_check
    _
  $region15: #{_forward_padded.1} parent=0 // pred_check_branch
    %17 = sbr.rel (0) target = $region17
  $region16: #{_forward_padded.1} parent=0 // pred_region
    _
  $region17: #{_forward_padded.1} parent=0 // pred_fallthru
    _
  // Predicated region
  $region18: #{_forward_padded.1} parent=0 // pred_check
    _
  $region19: #{_forward_padded.1} parent=0 // pred_check_branch
    %19 = sbr.rel (0) target = $region21
  $region20: #{_forward_padded.1} parent=0 // pred_region
    _
  $region21: #{_forward_padded.1} parent=0 // pred_fallthru
    _
  %v20 = vld [vmem:[%s0] sm:$0xff]
  %v21 = vld [vmem:[%s0 + $0x8] sm:$0xff]
  %v22 = vld [vmem:[%s0 + $0x10] sm:$0xff]
  %v23 = vld [vmem:[%s0 + $0x18] sm:$0xff]
  %v24 = vld [vmem:[%s0 + $0x20] sm:$0xff]
  %v25 = vld [vmem:[%s0 + $0x28] sm:$0xff]
  %v26 = vld [vmem:[%s0 + $0x30] sm:$0xff]
  %v27 = vld [vmem:[%s0 + $0x38] sm:$0xff]
  %v28 = vld [vmem:[%s0 + $0x40] sm:$0xff]
  %v29 = vld [vmem:[%s0 + $0x48] sm:$0xff]
  %v30 = vld [vmem:[%s0 + $0x50] sm:$0xff]
  %v31 = vld [vmem:[%s0 + $0x58] sm:$0xff]
  %v32 = vld [vmem:[%s0 + $0x60] sm:$0xff]
  %v33 = vld [vmem:[%s0 + $0x68] sm:$0xff]
  %v34 = vld [vmem:[%s0 + $0x70] sm:$0xff]
  %v35 = vld [vmem:[%s0 + $0x78] sm:$0xff]
  %v36 = vld [vmem:[%s0 + $0x80] sm:$0xff]
  %v37 = vld [vmem:[%s0 + $0x88] sm:$0xff]
  %v38 = vld [vmem:[%s0 + $0x90] sm:$0xff]
  %v39 = vld [vmem:[%s0 + $0x98] sm:$0xff]
  %v40 = vld [vmem:[%s0 + $0xa0] sm:$0xff]
  %v41 = vld [vmem:[%s0 + $0xa8] sm:$0xff]
  %v42 = vld [vmem:[%s0 + $0xb0] sm:$0xff]
  %v43 = vld [vmem:[%s0 + $0xb8] sm:$0xff]
  %v44 = vld [vmem:[%s0 + $0xc0] sm:$0xff]
  %v45 = vld [vmem:[%s0 + $0xc8] sm:$0xff]
  %v46 = vld [vmem:[%s0 + $0xd0] sm:$0xff]
  %v47 = vld [vmem:[%s0 + $0xd8] sm:$0xff]
  %v48 = vld [vmem:[%s0 + $0xe0] sm:$0xff]
  %v49 = vld [vmem:[%s0 + $0xe8] sm:$0xff]
  %v50 = vld [vmem:[%s0 + $0xf0] sm:$0xff]
  %v51 = vld [vmem:[%s0 + $0xf8] sm:$0xff]
  %v52 = vld [vmem:[%s1] sm:$0xff]
  %v53 = vld [vmem:[%s1 + $0x8] sm:$0xff]
  %v54 = vld [vmem:[%s1 + $0x10] sm:$0xff]
  %v55 = vld [vmem:[%s1 + $0x18] sm:$0xff]
  %v56 = vld [vmem:[%s2] sm:$0x1]
  %v58 = vperm.slane %v56, 0
  %vm60 = vcmask 261120
  %v62 = vsel %vm60, %v20, 0
  %v65 = vsel %vm60, %v21, 0
  %v68 = vsel %vm60, %v22, 0
  %v71 = vsel %vm60, %v23, 0
  %v74 = vsel %vm60, %v24, 0
  %v77 = vsel %vm60, %v25, 0
  %v80 = vsel %vm60, %v26, 0
  %v83 = vsel %vm60, %v27, 0
  %v86 = vsel %vm60, %v28, 0
  %v89 = vsel %vm60, %v29, 0
  %v92 = vsel %vm60, %v30, 0
  %v95 = vsel %vm60, %v31, 0
  %v98 = vsel %vm60, %v32, 0
  %v101 = vsel %vm60, %v33, 0
  %v104 = vsel %vm60, %v34, 0
  %v107 = vsel %vm60, %v35, 0
  %v110 = vsel %vm60, %v36, 0
  %v113 = vsel %vm60, %v37, 0
  %v116 = vsel %vm60, %v38, 0
  %v119 = vsel %vm60, %v39, 0
  %v122 = vsel %vm60, %v40, 0
  %v125 = vsel %vm60, %v41, 0
  %v128 = vsel %vm60, %v42, 0
  %v131 = vsel %vm60, %v43, 0
  %v134 = vsel %vm60, %v44, 0
  %v137 = vsel %vm60, %v45, 0
  %v140 = vsel %vm60, %v46, 0
  %v143 = vsel %vm60, %v47, 0
  %v146 = vsel %vm60, %v48, 0
  %v149 = vsel %vm60, %v49, 0
  %v152 = vsel %vm60, %v50, 0
  %v155 = vsel %vm60, %v51, 0
  %157 = vmatpush.msra.mxu0 0.0
  %158 = vmatpush.msra.mxu0 0.0
  %159 = vmatpush.msra.mxu0 0.0
  %160 = vmatpush.msra.mxu0 0.0
  %161 = vmatpush.msra.mxu0 0.0
  %162 = vmatpush.msra.mxu0 0.0
  %163 = vmatpush.msra.mxu0 0.0
  %164 = vmatpush.msra.mxu0 0.0
  %165 = vmatpush.msra.mxu0 0.0
  %166 = vmatpush.msra.mxu0 0.0
  %167 = vmatpush.msra.mxu0 0.0
  %168 = vmatpush.msra.mxu0 0.0
  %169 = vmatpush.msra.mxu0 %v55
  %170 = vmatpush.msra.mxu0 %v54
  %171 = vmatpush.msra.mxu0 %v53
  %172 = vmatpush.msra.mxu0 %v52
  %173 = vmatmul.f32.gmra.mxu0 %v62
  %v174 = vpop.f32.mrf.mxu0
  %v175 = vadd.f32 %v58, %v174
  %176 = vmatmul.f32.gmra.mxu0 %v65
  %v177 = vpop.f32.mrf.mxu0
  %v178 = vadd.f32 %v58, %v177
  %179 = vmatmul.f32.gmra.mxu0 %v68
  %v180 = vpop.f32.mrf.mxu0
  %v181 = vadd.f32 %v58, %v180
  %182 = vmatmul.f32.gmra.mxu0 %v71
  %v183 = vpop.f32.mrf.mxu0
  %v184 = vadd.f32 %v58, %v183
  %185 = vmatmul.f32.gmra.mxu0 %v74
  %v186 = vpop.f32.mrf.mxu0
  %v187 = vadd.f32 %v58, %v186
  %188 = vmatmul.f32.gmra.mxu0 %v77
  %v189 = vpop.f32.mrf.mxu0
  %v190 = vadd.f32 %v58, %v189
  %191 = vmatmul.f32.gmra.mxu0 %v80
  %v192 = vpop.f32.mrf.mxu0
  %v193 = vadd.f32 %v58, %v192
  %194 = vmatmul.f32.gmra.mxu0 %v83
  %v195 = vpop.f32.mrf.mxu0
  %v196 = vadd.f32 %v58, %v195
  %197 = vmatmul.f32.gmra.mxu0 %v86
  %v198 = vpop.f32.mrf.mxu0
  %v199 = vadd.f32 %v58, %v198
  %200 = vmatmul.f32.gmra.mxu0 %v89
  %v201 = vpop.f32.mrf.mxu0
  %v202 = vadd.f32 %v58, %v201
  %203 = vmatmul.f32.gmra.mxu0 %v92
  %v204 = vpop.f32.mrf.mxu0
  %v205 = vadd.f32 %v58, %v204
  %206 = vmatmul.f32.gmra.mxu0 %v95
  %v207 = vpop.f32.mrf.mxu0
  %v208 = vadd.f32 %v58, %v207
  %209 = vmatmul.f32.gmra.mxu0 %v98
  %v210 = vpop.f32.mrf.mxu0
  %v211 = vadd.f32 %v58, %v210
  %212 = vmatmul.f32.gmra.mxu0 %v101
  %v213 = vpop.f32.mrf.mxu0
  %v214 = vadd.f32 %v58, %v213
  %215 = vmatmul.f32.gmra.mxu0 %v104
  %v216 = vpop.f32.mrf.mxu0
  %v217 = vadd.f32 %v58, %v216
  %218 = vmatmul.f32.gmra.mxu0 %v107
  %v219 = vpop.f32.mrf.mxu0
  %v220 = vadd.f32 %v58, %v219
  %221 = vmatmul.f32.gmra.mxu0 %v110
  %v222 = vpop.f32.mrf.mxu0
  %v223 = vadd.f32 %v58, %v222
  %224 = vmatmul.f32.gmra.mxu0 %v113
  %v225 = vpop.f32.mrf.mxu0
  %v226 = vadd.f32 %v58, %v225
  %227 = vmatmul.f32.gmra.mxu0 %v116
  %v228 = vpop.f32.mrf.mxu0
  %v229 = vadd.f32 %v58, %v228
  %230 = vmatmul.f32.gmra.mxu0 %v119
  %v231 = vpop.f32.mrf.mxu0
  %v232 = vadd.f32 %v58, %v231
  %233 = vmatmul.f32.gmra.mxu0 %v122
  %v234 = vpop.f32.mrf.mxu0
  %v235 = vadd.f32 %v58, %v234
  %236 = vmatmul.f32.gmra.mxu0 %v125
  %v237 = vpop.f32.mrf.mxu0
  %v238 = vadd.f32 %v58, %v237
  %239 = vmatmul.f32.gmra.mxu0 %v128
  %v240 = vpop.f32.mrf.mxu0
  %v241 = vadd.f32 %v58, %v240
  %242 = vmatmul.f32.gmra.mxu0 %v131
  %v243 = vpop.f32.mrf.mxu0
  %v244 = vadd.f32 %v58, %v243
  %245 = vmatmul.f32.gmra.mxu0 %v134
  %v246 = vpop.f32.mrf.mxu0
  %v247 = vadd.f32 %v58, %v246
  %248 = vmatmul.f32.gmra.mxu0 %v137
  %v249 = vpop.f32.mrf.mxu0
  %v250 = vadd.f32 %v58, %v249
  %251 = vmatmul.f32.gmra.mxu0 %v140
  %v252 = vpop.f32.mrf.mxu0
  %v253 = vadd.f32 %v58, %v252
  %254 = vmatmul.f32.gmra.mxu0 %v143
  %v255 = vpop.f32.mrf.mxu0
  %v256 = vadd.f32 %v58, %v255
  %257 = vmatmul.f32.gmra.mxu0 %v146
  %v258 = vpop.f32.mrf.mxu0
  %v259 = vadd.f32 %v58, %v258
  %260 = vmatmul.f32.gmra.mxu0 %v149
  %v261 = vpop.f32.mrf.mxu0
  %v262 = vadd.f32 %v58, %v261
  %263 = vmatmul.f32.gmra.mxu0 %v152
  %v264 = vpop.f32.mrf.mxu0
  %v265 = vadd.f32 %v58, %v264
  %266 = vmatmul.f32.gmra.mxu0 %v155
  %v267 = vpop.f32.mrf.mxu0
  %v268 = vadd.f32 %v58, %v267
  %269 = vdwg.mxu0
  %v270 = vmax.f32 %v175, 0.0
  %v271 = vmax.f32 %v178, 0.0
  %v272 = vmax.f32 %v181, 0.0
  %v273 = vmax.f32 %v184, 0.0
  %v274 = vmax.f32 %v187, 0.0
  %v275 = vmax.f32 %v190, 0.0
  %v276 = vmax.f32 %v193, 0.0
  %v277 = vmax.f32 %v196, 0.0
  %v278 = vmax.f32 %v199, 0.0
  %v279 = vmax.f32 %v202, 0.0
  %v280 = vmax.f32 %v205, 0.0
  %v281 = vmax.f32 %v208, 0.0
  %v282 = vmax.f32 %v211, 0.0
  %v283 = vmax.f32 %v214, 0.0
  %v284 = vmax.f32 %v217, 0.0
  %v285 = vmax.f32 %v220, 0.0
  %v286 = vmax.f32 %v223, 0.0
  %v287 = vmax.f32 %v226, 0.0
  %v288 = vmax.f32 %v229, 0.0
  %v289 = vmax.f32 %v232, 0.0
  %v290 = vmax.f32 %v235, 0.0
  %v291 = vmax.f32 %v238, 0.0
  %v292 = vmax.f32 %v241, 0.0
  %v293 = vmax.f32 %v244, 0.0
  %v294 = vmax.f32 %v247, 0.0
  %v295 = vmax.f32 %v250, 0.0
  %v296 = vmax.f32 %v253, 0.0
  %v297 = vmax.f32 %v256, 0.0
  %v298 = vmax.f32 %v259, 0.0
  %v299 = vmax.f32 %v262, 0.0
  %v300 = vmax.f32 %v265, 0.0
  %v301 = vmax.f32 %v268, 0.0
  %v302 = vld [vmem:[%s3] sm:$0xff]
  %v303 = vld [vmem:[%s3 + $0x8] sm:$0xff]
  %v304 = vld [vmem:[%s3 + $0x10] sm:$0xff]
  %v305 = vld [vmem:[%s3 + $0x18] sm:$0xff]
  %v306 = vld [vmem:[%s3 + $0x20] sm:$0xff]
  %v307 = vld [vmem:[%s3 + $0x28] sm:$0xff]
  %v308 = vld [vmem:[%s3 + $0x30] sm:$0xff]
  %v309 = vld [vmem:[%s3 + $0x38] sm:$0xff]
  %v310 = vld [vmem:[%s3 + $0x40] sm:$0xff]
  %v311 = vld [vmem:[%s3 + $0x48] sm:$0xff]
  %v312 = vld [vmem:[%s3 + $0x50] sm:$0xff]
  %v313 = vld [vmem:[%s3 + $0x58] sm:$0xff]
  %v314 = vld [vmem:[%s3 + $0x60] sm:$0xff]
  %v315 = vld [vmem:[%s3 + $0x68] sm:$0xff]
  %v316 = vld [vmem:[%s3 + $0x70] sm:$0xff]
  %v317 = vld [vmem:[%s3 + $0x78] sm:$0xff]
  %v318 = vld [vmem:[%s4] sm:$0x1]
  %v320 = vperm.slane %v318, 0
  %322 = vmatpush.msra.mxu0 %v317
  %323 = vmatpush.msra.mxu0 %v316
  %324 = vmatpush.msra.mxu0 %v315
  %325 = vmatpush.msra.mxu0 %v314
  %326 = vmatpush.msra.mxu0 %v313
  %327 = vmatpush.msra.mxu0 %v312
  %328 = vmatpush.msra.mxu0 %v311
  %329 = vmatpush.msra.mxu0 %v310
  %330 = vmatpush.msra.mxu0 %v309
  %331 = vmatpush.msra.mxu0 %v308
  %332 = vmatpush.msra.mxu0 %v307
  %333 = vmatpush.msra.mxu0 %v306
  %334 = vmatpush.msra.mxu0 %v305
  %335 = vmatpush.msra.mxu0 %v304
  %336 = vmatpush.msra.mxu0 %v303
  %337 = vmatpush.msra.mxu0 %v302
  %338 = vmatmul.f32.gmra.mxu0 %v270
  %v339 = vpop.f32.mrf.mxu0
  %v340 = vadd.f32 %v320, %v339
  %341 = vmatmul.f32.gmra.mxu0 %v271
  %v342 = vpop.f32.mrf.mxu0
  %v343 = vadd.f32 %v320, %v342
  %344 = vmatmul.f32.gmra.mxu0 %v272
  %v345 = vpop.f32.mrf.mxu0
  %v346 = vadd.f32 %v320, %v345
  %347 = vmatmul.f32.gmra.mxu0 %v273
  %v348 = vpop.f32.mrf.mxu0
  %v349 = vadd.f32 %v320, %v348
  %350 = vmatmul.f32.gmra.mxu0 %v274
  %v351 = vpop.f32.mrf.mxu0
  %v352 = vadd.f32 %v320, %v351
  %353 = vmatmul.f32.gmra.mxu0 %v275
  %v354 = vpop.f32.mrf.mxu0
  %v355 = vadd.f32 %v320, %v354
  %356 = vmatmul.f32.gmra.mxu0 %v276
  %v357 = vpop.f32.mrf.mxu0
  %v358 = vadd.f32 %v320, %v357
  %359 = vmatmul.f32.gmra.mxu0 %v277
  %v360 = vpop.f32.mrf.mxu0
  %v361 = vadd.f32 %v320, %v360
  %362 = vmatmul.f32.gmra.mxu0 %v278
  %v363 = vpop.f32.mrf.mxu0
  %v364 = vadd.f32 %v320, %v363
  %365 = vmatmul.f32.gmra.mxu0 %v279
  %v366 = vpop.f32.mrf.mxu0
  %v367 = vadd.f32 %v320, %v366
  %368 = vmatmul.f32.gmra.mxu0 %v280
  %v369 = vpop.f32.mrf.mxu0
  %v370 = vadd.f32 %v320, %v369
  %371 = vmatmul.f32.gmra.mxu0 %v281
  %v372 = vpop.f32.mrf.mxu0
  %v373 = vadd.f32 %v320, %v372
  %374 = vmatmul.f32.gmra.mxu0 %v282
  %v375 = vpop.f32.mrf.mxu0
  %v376 = vadd.f32 %v320, %v375
  %377 = vmatmul.f32.gmra.mxu0 %v283
  %v378 = vpop.f32.mrf.mxu0
  %v379 = vadd.f32 %v320, %v378
  %380 = vmatmul.f32.gmra.mxu0 %v284
  %v381 = vpop.f32.mrf.mxu0
  %v382 = vadd.f32 %v320, %v381
  %383 = vmatmul.f32.gmra.mxu0 %v285
  %v384 = vpop.f32.mrf.mxu0
  %v385 = vadd.f32 %v320, %v384
  %386 = vmatmul.f32.gmra.mxu0 %v286
  %v387 = vpop.f32.mrf.mxu0
  %v388 = vadd.f32 %v320, %v387
  %389 = vmatmul.f32.gmra.mxu0 %v287
  %v390 = vpop.f32.mrf.mxu0
  %v391 = vadd.f32 %v320, %v390
  %392 = vmatmul.f32.gmra.mxu0 %v288
  %v393 = vpop.f32.mrf.mxu0
  %v394 = vadd.f32 %v320, %v393
  %395 = vmatmul.f32.gmra.mxu0 %v289
  %v396 = vpop.f32.mrf.mxu0
  %v397 = vadd.f32 %v320, %v396
  %398 = vmatmul.f32.gmra.mxu0 %v290
  %v399 = vpop.f32.mrf.mxu0
  %v400 = vadd.f32 %v320, %v399
  %401 = vmatmul.f32.gmra.mxu0 %v291
  %v402 = vpop.f32.mrf.mxu0
  %v403 = vadd.f32 %v320, %v402
  %404 = vmatmul.f32.gmra.mxu0 %v292
  %v405 = vpop.f32.mrf.mxu0
  %v406 = vadd.f32 %v320, %v405
  %407 = vmatmul.f32.gmra.mxu0 %v293
  %v408 = vpop.f32.mrf.mxu0
  %v409 = vadd.f32 %v320, %v408
  %410 = vmatmul.f32.gmra.mxu0 %v294
  %v411 = vpop.f32.mrf.mxu0
  %v412 = vadd.f32 %v320, %v411
  %413 = vmatmul.f32.gmra.mxu0 %v295
  %v414 = vpop.f32.mrf.mxu0
  %v415 = vadd.f32 %v320, %v414
  %416 = vmatmul.f32.gmra.mxu0 %v296
  %v417 = vpop.f32.mrf.mxu0
  %v418 = vadd.f32 %v320, %v417
  %419 = vmatmul.f32.gmra.mxu0 %v297
  %v420 = vpop.f32.mrf.mxu0
  %v421 = vadd.f32 %v320, %v420
  %422 = vmatmul.f32.gmra.mxu0 %v298
  %v423 = vpop.f32.mrf.mxu0
  %v424 = vadd.f32 %v320, %v423
  %425 = vmatmul.f32.gmra.mxu0 %v299
  %v426 = vpop.f32.mrf.mxu0
  %v427 = vadd.f32 %v320, %v426
  %428 = vmatmul.f32.gmra.mxu0 %v300
  %v429 = vpop.f32.mrf.mxu0
  %v430 = vadd.f32 %v320, %v429
  %431 = vmatmul.f32.gmra.mxu0 %v301
  %v432 = vpop.f32.mrf.mxu0
  %v433 = vadd.f32 %v320, %v432
  %434 = vdwg.mxu0
  %435 = vst [vmem:[%s5] sm:$0xff] %v340
  %436 = vst [vmem:[%s5 + $0x8] sm:$0xff] %v343
  %437 = vst [vmem:[%s5 + $0x10] sm:$0xff] %v346
  %438 = vst [vmem:[%s5 + $0x18] sm:$0xff] %v349
  %439 = vst [vmem:[%s5 + $0x20] sm:$0xff] %v352
  %440 = vst [vmem:[%s5 + $0x28] sm:$0xff] %v355
  %441 = vst [vmem:[%s5 + $0x30] sm:$0xff] %v358
  %442 = vst [vmem:[%s5 + $0x38] sm:$0xff] %v361
  %443 = vst [vmem:[%s5 + $0x40] sm:$0xff] %v364
  %444 = vst [vmem:[%s5 + $0x48] sm:$0xff] %v367
  %445 = vst [vmem:[%s5 + $0x50] sm:$0xff] %v370
  %446 = vst [vmem:[%s5 + $0x58] sm:$0xff] %v373
  %447 = vst [vmem:[%s5 + $0x60] sm:$0xff] %v376
  %448 = vst [vmem:[%s5 + $0x68] sm:$0xff] %v379
  %449 = vst [vmem:[%s5 + $0x70] sm:$0xff] %v382
  %450 = vst [vmem:[%s5 + $0x78] sm:$0xff] %v385
  %451 = vst [vmem:[%s5 + $0x80] sm:$0xff] %v388
  %452 = vst [vmem:[%s5 + $0x88] sm:$0xff] %v391
  %453 = vst [vmem:[%s5 + $0x90] sm:$0xff] %v394
  %454 = vst [vmem:[%s5 + $0x98] sm:$0xff] %v397
  %455 = vst [vmem:[%s5 + $0xa0] sm:$0xff] %v400
  %456 = vst [vmem:[%s5 + $0xa8] sm:$0xff] %v403
  %457 = vst [vmem:[%s5 + $0xb0] sm:$0xff] %v406
  %458 = vst [vmem:[%s5 + $0xb8] sm:$0xff] %v409
  %459 = vst [vmem:[%s5 + $0xc0] sm:$0xff] %v412
  %460 = vst [vmem:[%s5 + $0xc8] sm:$0xff] %v415
  %461 = vst [vmem:[%s5 + $0xd0] sm:$0xff] %v418
  %462 = vst [vmem:[%s5 + $0xd8] sm:$0xff] %v421
  %463 = vst [vmem:[%s5 + $0xe0] sm:$0xff] %v424
  %464 = vst [vmem:[%s5 + $0xe8] sm:$0xff] %v427
  %465 = vst [vmem:[%s5 + $0xf0] sm:$0xff] %v430
  %466 = vst [vmem:[%s5 + $0xf8] sm:$0xff] %v433
  // Predicated region
  $region22: #{_forward_padded.1} parent=0 // pred_check
    _
  $region23: #{_forward_padded.1} parent=0 // pred_check_branch
    %468 = sbr.rel (0) target = $region25
  $region24: #{_forward_padded.1} parent=0 // pred_region
    _
  $region25: #{_forward_padded.1} parent=0 // pred_fallthru
    _
  // Predicated region
  $region26: #{_forward_padded.1} parent=0 // pred_check
    _
  $region27: #{_forward_padded.1} parent=0 // pred_check_branch
    %470 = sbr.rel (0) target = $region29
  $region28: #{_forward_padded.1} parent=0 // pred_region
    _
  $region29: #{_forward_padded.1} parent=0 // pred_fallthru
    _

</llo_original>
